<compile_context>
chip_gen: v5e
topology: v5e:2x2
jax: 0.10.0
libtpu: 0.0.40
codegen_flags: <defaults>
</compile_context>

<pallas_src>
import jax
import jax.numpy as jnp
from jax.experimental import pallas as pl
from jax.experimental.pallas import tpu as pltpu


def _round_up(x, m):
    return ((x + m - 1) // m) * m


# ----------------------------------------------------------------------------
# Pallas kernel: fused GLU feed-forward layer
#   h   = img @ W13_img + txt @ W13_txt + b13     (bf16 MXU, f32 accumulate)
#   h1  = h[:, :H]   (W1 branch)
#   h3s = h[:, H:]   (W3 branch, w2 pre-folded)
#   g   = silu(h1) * h3s                          (f32 VPU/EUP)
#   s_i = sum_j g[i, j] + b2                      (XLU transpose + sublane sum)
#   out = [1, block_b] lane-dense score row
# ----------------------------------------------------------------------------
def glu_ffn_kernel(img_ref, txt_ref, w13i_ref, w13t_ref, b13_ref, b2_ref, o_ref):
    # Stage 1: two accumulating MXU dots replace the [img;txt] concat matmul.
    h = jnp.dot(img_ref[...], w13i_ref[...], preferred_element_type=jnp.float32)
    h = h + jnp.dot(txt_ref[...], w13t_ref[...], preferred_element_type=jnp.float32)
    h = h + b13_ref[...]                                  # [bb, 2*H_pad] f32

    h_pad = b13_ref.shape[1] // 2                         # static
    h1 = h[:, :h_pad]                                     # W1 branch
    h3s = h[:, h_pad:]                                    # W3 branch (w2 folded in)

    # silu via EUP ops: exp + approximate reciprocal (keeps divide off VALU).
    sig = pl.reciprocal(1.0 + jnp.exp(-h1), approx=True)
    g = (h1 * sig) * h3s                                  # [bb, H_pad] f32

    # score_i = sum_j g[i, j] + b2.  Transpose (XLU, otherwise idle) so the
    # lane reduction lands as a lane-dense [1, bb] row -> packed writeback.
    gT = jnp.transpose(g)                                 # [H_pad, bb]
    score = jnp.sum(gT, axis=0, keepdims=True) + b2_ref[0, 0]   # [1, bb]

    o_ref[0] = score.astype(o_ref.dtype)                  # o_ref block: (1, 1, bb)


# ----------------------------------------------------------------------------
# One-time weight preparation (mirrors module __init__): fuse W1/W3, fold w2
# into the W3 branch, pad to (8, 128)-aligned tiles, cast matmul weights bf16.
# ----------------------------------------------------------------------------
def prepare_glu_weights(glu_params):
    w1, b1 = glu_params["w1"], glu_params["b1"]
    w3, b3 = glu_params["w3"], glu_params["b3"]
    w2, b2 = glu_params["w2"], glu_params["b2"]
    D, H = w1.shape
    E = D // 2
    assert D == 2 * E
    E_pad = _round_up(E, 128)
    H_pad = _round_up(H, 128)
    f32 = jnp.float32

    # Fold w2 (out_dim == 1) into the W3 branch:
    #   sum_j silu(h1_j) * (x@W3 + b3)_j * w2_j
    # = sum_j silu(h1_j) * (x@(W3*w2) + b3*w2)_j
    w2v = w2.reshape(-1).astype(f32)                       # [H]
    w3s = w3.astype(f32) * w2v[None, :]
    b3s = b3.reshape(1, H).astype(f32) * w2v[None, :]

    def pack_half(w1_half, w3_half):
        m = jnp.zeros((E_pad, 2 * H_pad), f32)
        m = m.at[:E, :H].set(w1_half)
        m = m.at[:E, H_pad:H_pad + H].set(w3_half)
        return m.astype(jnp.bfloat16)                      # bf16 MXU operand

    w13_img = pack_half(w1[:E].astype(f32), w3s[:E])       # rows for image half
    w13_txt = pack_half(w1[E:].astype(f32), w3s[E:])       # rows for text half

    b13 = jnp.zeros((1, 2 * H_pad), f32)
    b13 = b13.at[:, :H].set(b1.reshape(1, H).astype(f32))
    b13 = b13.at[:, H_pad:H_pad + H].set(b3s)

    b2s = b2.reshape(1, 1).astype(f32)                     # scalar bias via SMEM
    return dict(w13_img=w13_img, w13_txt=w13_txt, b13=b13, b2=b2s,
                embed_dim=E, hidden_dim=H)


# ----------------------------------------------------------------------------
# Wrapper: bf16 cast fused with padding, batch grid, packed output.
# ----------------------------------------------------------------------------
def _pad_cast_bf16(x, B_pad, E_pad):
    B, E = x.shape
    x = x.astype(jnp.bfloat16)                             # cast once, bf16 DMA
    if B_pad == B and E_pad == E:
        return x                                           # no pad round-trip
    return jnp.zeros((B_pad, E_pad), jnp.bfloat16).at[:B, :E].set(x)


def glu_head_pallas(image_embed, text_embed, packed, *, block_b=None):
    B, E = image_embed.shape
    assert E == packed["embed_dim"]
    E_pad = packed["w13_img"].shape[0]
    H2_pad = packed["b13"].shape[1]
    H_pad = H2_pad // 2

    if block_b is None:
        # Large tiles amortize the ~0.35us per-step overhead; keep block_b a
        # multiple of 128 (lane-dense output, aligned in-kernel transpose).
        half = -(-B // 2)
        block_b = min(1024, max(128, _round_up(half, 128)))
    # >= 2 grid tiles so the "parallel" batch axis can shard across v7x's two
    # TensorCores (harmless single-TC loop on v5e/v6e).
    B_pad = max(_round_up(B, block_b), 2 * block_b)
    n_tiles = B_pad // block_b

    img_p = _pad_cast_bf16(image_embed, B_pad, E_pad)
    txt_p = _pad_cast_bf16(text_embed, B_pad, E_pad)

    out = pl.pallas_call(
        glu_ffn_kernel,
        out_shape=jax.ShapeDtypeStruct((n_tiles, 1, block_b), jnp.float32),
        grid_spec=pltpu.PrefetchScalarGridSpec(
            num_scalar_prefetch=0,
            grid=(n_tiles,),
            in_specs=[
                pl.BlockSpec((block_b, E_pad), lambda i: (i, 0)),     # img tile (bf16)
                pl.BlockSpec((block_b, E_pad), lambda i: (i, 0)),     # txt tile (bf16)
                pl.BlockSpec((E_pad, H2_pad), lambda i: (0, 0)),      # W13 img half
                pl.BlockSpec((E_pad, H2_pad), lambda i: (0, 0)),      # W13 txt half
                pl.BlockSpec((1, H2_pad), lambda i: (0, 0)),          # b13
                pl.BlockSpec(memory_space=pltpu.MemorySpace.SMEM),    # b2 scalar
            ],
            out_specs=pl.BlockSpec((1, 1, block_b), lambda i: (i, 0, 0)),
        ),
        compiler_params=pltpu.CompilerParams(
            dimension_semantics=("parallel",),
            vmem_limit_bytes=64 * 1024 * 1024,
        ),
        cost_estimate=pl.CostEstimate(
            flops=2 * B_pad * (2 * E_pad) * (2 * H_pad) + 6 * B_pad * H_pad,
            transcendentals=B_pad * H_pad,
            bytes_accessed=(img_p.size + txt_p.size) * 2          # bf16 activations
                           + (packed["w13_img"].size + packed["w13_txt"].size) * 2
                           + packed["b13"].size * 4 + 4
                           + B_pad * 4,                            # packed output
        ),
    )(img_p, txt_p, packed["w13_img"], packed["w13_txt"], packed["b13"], packed["b2"])

    return out.reshape(B_pad)[:B].reshape(B, 1)            # [B, 1] scores


# ----------------------------------------------------------------------------
# Deterministic parameter init (synthetic; mirrors module __init__ shapes)
# ----------------------------------------------------------------------------
def init_glu_params(key, dim, hidden_dim, out_dim):
    k1, k2, k3, k4, k5, k6 = jax.random.split(key, 6)
    s_in = 1.0 / jnp.sqrt(dim)
    s_h = 1.0 / jnp.sqrt(hidden_dim)
    return dict(
        w1=jax.random.uniform(k1, (dim, hidden_dim), jnp.float32, -s_in, s_in),
        b1=jax.random.uniform(k2, (1, hidden_dim), jnp.float32, -s_in, s_in),
        w3=jax.random.uniform(k3, (dim, hidden_dim), jnp.float32, -s_in, s_in),
        b3=jax.random.uniform(k4, (1, hidden_dim), jnp.float32, -s_in, s_in),
        w2=jax.random.uniform(k5, (hidden_dim, out_dim), jnp.float32, -s_h, s_h),
        b2=jax.random.uniform(k6, (1, out_dim), jnp.float32, -s_h, s_h),
    )


def init_mock_clip_params(key, img_flat_dim, vocab, seq, embed_dim):
    k1, k2, k3 = jax.random.split(key, 3)
    return dict(
        w_img=jax.random.normal(k1, (img_flat_dim, embed_dim), jnp.float32) * 0.02,
        tok_emb=jax.random.normal(k2, (vocab, embed_dim), jnp.float32) * 0.02,
        w_txt=jax.random.normal(k3, (embed_dim, embed_dim), jnp.float32) * 0.02,
    )


# ----------------------------------------------------------------------------
# ScoringModel forward (plain-JAX glue + Pallas GLU head)
# ----------------------------------------------------------------------------
def mock_clip_forward(image, text, params):
    # image: [B, C, H, W] (NCHW, matching the PyTorch convention) -> flatten
    B = image.shape[0]
    img_flat = image.reshape(B, -1)
    image_embed = img_flat @ params["w_img"]              # [B, embed_dim]
    tok = params["tok_emb"][text]                         # [B, seq, embed_dim]
    text_embed = tok.mean(axis=1) @ params["w_txt"]       # [B, embed_dim]
    return image_embed, text_embed


def scoring_model_forward(image, text, clip_params, packed_glu):
    image_embed, text_embed = mock_clip_forward(image, text, clip_params)
    # GluFeedForwardModel with n_layers=1 -> single GLU layer, out_dim=1.
    # Embeddings passed separately; the concat is realized inside the kernel
    # as two accumulating matmuls against the img/txt halves of W13.
    return glu_head_pallas(image_embed, text_embed, packed_glu)   # [B, 1]


if __name__ == "__main__":
    # Small synthetic shapes consistent with the module's forward.
    B, C, H_IMG, W_IMG = 2, 3, 16, 16  # NCHW image
    SEQ, VOCAB = 8, 64                 # token ids
    EMBED_DIM = 16                     # clip_model.visual.output_dim
    CONCAT_DIM = EMBED_DIM * 2         # = 32
    HIDDEN_DIM = CONCAT_DIM            # hidden_dim_mod = 1
    OUT_DIM = 1                        # scalar score per example

    key = jax.random.PRNGKey(0)
    k_img, k_txt, k_clip, k_glu = jax.random.split(key, 4)

    image = jax.random.normal(k_img, (B, C, H_IMG, W_IMG), jnp.float32)
    text = jax.random.randint(k_txt, (B, SEQ), 0, VOCAB, jnp.int32)

    clip_params = init_mock_clip_params(k_clip, C * H_IMG * W_IMG, VOCAB, SEQ, EMBED_DIM)
    glu_params = init_glu_params(k_glu, CONCAT_DIM, HIDDEN_DIM, OUT_DIM)

    # One-time weight prep (amortized to init, not paid per forward).
    packed_glu = prepare_glu_weights(glu_params)

    scores = scoring_model_forward(image, text, clip_params, packed_glu)
    scores = jax.block_until_ready(scores)
    assert scores.shape == (B, 1) and scores.dtype == jnp.float32

    # Reference check against plain-JAX f32 math (kernel uses bf16 matmul
    # operands with f32 accumulation -> looser tolerance).
    img_e, txt_e = mock_clip_forward(image, text, clip_params)
    x = jnp.concatenate([img_e, txt_e], axis=1)
    h1 = x @ glu_params["w1"] + glu_params["b1"]
    h3 = x @ glu_params["w3"] + glu_params["b3"]
    ref = (jax.nn.silu(h1) * h3) @ glu_params["w2"] + glu_params["b2"]
    assert jnp.allclose(scores, ref, atol=2e-2, rtol=2e-2), (scores, ref)

    print("KERNEL_OK")
</pallas_src>

<mosaic_0001>
module attributes {stable_mosaic.version = 11 : i64} {
  func.func @glu_ffn_kernel(%arg0: i32, %arg1: memref<128x128xbf16, #tpu.memory_space<vmem>>, %arg2: memref<128x128xbf16, #tpu.memory_space<vmem>>, %arg3: memref<128x256xbf16, #tpu.memory_space<vmem>>, %arg4: memref<128x256xbf16, #tpu.memory_space<vmem>>, %arg5: memref<1x256xf32, #tpu.memory_space<vmem>>, %arg6: memref<1x1xf32, #tpu.memory_space<smem>>, %arg7: memref<1x1x128xf32, #tpu.memory_space<vmem>>) attributes {dimension_semantics = [#tpu.dimension_semantics<parallel>], iteration_bounds = array<i64: 2>, scalar_prefetch = 0 : i64, scratch_operands = 0 : i64, tpu.core_type = #tpu.core_type<tc>, window_params = [{transform_indices = @transform_0, window_bounds = array<i64: 128, 128>}, {transform_indices = @transform_1, window_bounds = array<i64: 128, 128>}, {pipeline_mode = #tpu.pipeline_mode<synchronous>, transform_indices = @transform_2, window_bounds = array<i64: 128, 256>}, {pipeline_mode = #tpu.pipeline_mode<synchronous>, transform_indices = @transform_3, window_bounds = array<i64: 128, 256>}, {pipeline_mode = #tpu.pipeline_mode<synchronous>, transform_indices = @transform_4, window_bounds = array<i64: 1, 256>}, {transform_indices = @transform_5, window_bounds = array<i64: 1, 1>}, {transform_indices = @transform_6, window_bounds = array<i64: 1, 1, 128>}]} {
    %c0 = arith.constant 0 : index
    %c0_0 = arith.constant 0 : index
    %0 = vector.load %arg1[%c0, %c0_0] : memref<128x128xbf16, #tpu.memory_space<vmem>>, vector<128x128xbf16>
    %c0_1 = arith.constant 0 : index
    %c0_2 = arith.constant 0 : index
    %1 = vector.load %arg3[%c0_1, %c0_2] : memref<128x256xbf16, #tpu.memory_space<vmem>>, vector<128x256xbf16>
    %cst = arith.constant dense<0.000000e+00> : vector<128x256xf32>
    %2 = tpu.matmul %0, %1, %cst {dimension_numbers = #tpu.dot_dimension_numbers<[1], [0], [0], [1], [0, 0, 1, 1], [], []>} : vector<128x128xbf16>, vector<128x256xbf16>, vector<128x256xf32> -> vector<128x256xf32>
    %c0_3 = arith.constant 0 : index
    %c0_4 = arith.constant 0 : index
    %3 = vector.load %arg2[%c0_3, %c0_4] : memref<128x128xbf16, #tpu.memory_space<vmem>>, vector<128x128xbf16>
    %c0_5 = arith.constant 0 : index
    %c0_6 = arith.constant 0 : index
    %4 = vector.load %arg4[%c0_5, %c0_6] : memref<128x256xbf16, #tpu.memory_space<vmem>>, vector<128x256xbf16>
    %cst_7 = arith.constant dense<0.000000e+00> : vector<128x256xf32>
    %5 = tpu.matmul %3, %4, %cst_7 {dimension_numbers = #tpu.dot_dimension_numbers<[1], [0], [0], [1], [0, 0, 1, 1], [], []>} : vector<128x128xbf16>, vector<128x256xbf16>, vector<128x256xf32> -> vector<128x256xf32>
    %6 = arith.addf %2, %5 : vector<128x256xf32>
    %c0_8 = arith.constant 0 : index
    %c0_9 = arith.constant 0 : index
    %7 = vector.load %arg5[%c0_8, %c0_9] : memref<1x256xf32, #tpu.memory_space<vmem>>, vector<1x256xf32>
    %8 = vector.broadcast %7 : vector<1x256xf32> to vector<128x256xf32>
    %9 = arith.addf %6, %8 : vector<128x256xf32>
    %10 = vector.extract_strided_slice %9 {offsets = [0, 0], sizes = [128, 128], strides = [1, 1]} : vector<128x256xf32> to vector<128x128xf32>
    %11 = vector.extract_strided_slice %9 {offsets = [0, 128], sizes = [128, 128], strides = [1, 1]} : vector<128x256xf32> to vector<128x128xf32>
    %cst_10 = arith.constant 0.000000e+00 : f32
    %12 = vector.broadcast %cst_10 : f32 to vector<128x128xf32>
    %13 = arith.subf %12, %10 : vector<128x128xf32>
    %14 = math.exp %13 : vector<128x128xf32>
    %cst_11 = arith.constant 1.000000e+00 : f32
    %15 = vector.broadcast %cst_11 : f32 to vector<128x128xf32>
    %16 = arith.addf %15, %14 : vector<128x128xf32>
    %17 = tpu.reciprocal %16 {approx = true} : vector<128x128xf32> -> vector<128x128xf32>
    %18 = arith.mulf %10, %17 : vector<128x128xf32>
    %19 = arith.mulf %18, %11 : vector<128x128xf32>
    %20 = tpu.transpose %19, [1, 0] : vector<128x128xf32> -> vector<128x128xf32>
    %cst_12 = arith.constant dense<0.000000e+00> : vector<128xf32>
    %21 = vector.multi_reduction <add>, %20, %cst_12 [0] : vector<128x128xf32> to vector<128xf32>
    %22 = vector.shape_cast %21 : vector<128xf32> to vector<1x128xf32>
    %c0_13 = arith.constant 0 : index
    %c0_14 = arith.constant 0 : index
    %23 = memref.load %arg6[%c0_13, %c0_14] : memref<1x1xf32, #tpu.memory_space<smem>>
    %24 = vector.broadcast %23 : f32 to vector<1x128xf32>
    %25 = arith.addf %22, %24 : vector<1x128xf32>
    %c0_15 = arith.constant 0 : index
    %c0_16 = arith.constant 0 : index
    %c0_17 = arith.constant 0 : index
    %26 = vector.load %arg7[%c0_15, %c0_16, %c0_17] : memref<1x1x128xf32, #tpu.memory_space<vmem>>, vector<1x1x128xf32>
    %27 = vector.shape_cast %26 : vector<1x1x128xf32> to vector<1x128xf32>
    %28 = vector.shape_cast %25 : vector<1x128xf32> to vector<1x1x128xf32>
    tpu.vector_store %arg7[%c0_15, %c0_16, %c0_17], %28 {strides = array<i32>} : memref<1x1x128xf32, #tpu.memory_space<vmem>>, vector<1x1x128xf32>,
    return
  }
  func.func @transform_0(%arg0: i32) -> (i32, i32) {
    %c0_i32 = arith.constant 0 : i32
    %c0_i32_0 = arith.constant 0 : i32
    return %arg0, %c0_i32 : i32, i32
  }
  func.func @transform_1(%arg0: i32) -> (i32, i32) {
    %c0_i32 = arith.constant 0 : i32
    %c0_i32_0 = arith.constant 0 : i32
    return %arg0, %c0_i32 : i32, i32
  }
  func.func @transform_2(%arg0: i32) -> (i32, i32) {
    %c0_i32 = arith.constant 0 : i32
    %c0_i32_0 = arith.constant 0 : i32
    %c0_i32_1 = arith.constant 0 : i32
    return %c0_i32, %c0_i32_0 : i32, i32
  }
  func.func @transform_3(%arg0: i32) -> (i32, i32) {
    %c0_i32 = arith.constant 0 : i32
    %c0_i32_0 = arith.constant 0 : i32
    %c0_i32_1 = arith.constant 0 : i32
    return %c0_i32, %c0_i32_0 : i32, i32
  }
  func.func @transform_4(%arg0: i32) -> (i32, i32) {
    %c0_i32 = arith.constant 0 : i32
    %c0_i32_0 = arith.constant 0 : i32
    %c0_i32_1 = arith.constant 0 : i32
    return %c0_i32, %c0_i32_0 : i32, i32
  }
  func.func @transform_5(%arg0: i32) -> (i32, i32) {
    %c0_i32 = arith.constant 0 : i32
    %c0_i32_0 = arith.constant 0 : i32
    %c0_i32_1 = arith.constant 0 : i32
    return %c0_i32, %c0_i32_0 : i32, i32
  }
  func.func @transform_6(%arg0: i32) -> (i32, i32, i32) {
    %c0_i32 = arith.constant 0 : i32
    %c0_i32_0 = arith.constant 0 : i32
    %c0_i32_1 = arith.constant 0 : i32
    return %arg0, %c0_i32, %c0_i32_0 : i32, i32, i32
  }
}

</mosaic_0001>

<llo_original>
// kernel: tpu_custom_call.1
$region0: #{tpu_custom_call.1}
  #allocation0 [shape = 'u32[]', space=smem, size = 0x4, offset = 0x4, fixed_abs, tag = 'smem constant byte address 0x4 - core index']
  #allocation1 [shape = 'u32[72,128]{1,0:T(1,128)}', space=vmem, size = 0x9000, scoped, tag = 'internal scratch']
  #allocation2 [shape = 'f32[1,1]{1,0:T(1,128)S(6)}', space=smem, size = 0x200, scoped, tag = 'scoped memory for tpu_custom_call.1']
  %s0 = inlined_call_operand.hbm [shape: bf16[256,128], index: 0, kind: input, shape index: {}]
  %s1 = inlined_call_operand.hbm [shape: bf16[256,128], index: 1, kind: input, shape index: {}]
  %s2 = inlined_call_operand.hbm [shape: bf16[128,256], index: 2, kind: input, shape index: {}]
  %s3 = inlined_call_operand.hbm [shape: bf16[128,256], index: 3, kind: input, shape index: {}]
  %s4 = inlined_call_operand.vmem [shape: f32[1,256], index: 4, kind: input, shape index: {}]
  %s5 = inlined_call_operand.<no memory space> [shape: f32[1,1], index: 5, kind: input, shape index: {}]
  %s6 = inlined_call_operand.hbm [shape: f32[2,1,128], index: 6, kind: output, shape index: {}]
  %s7 = sld [smem:[#allocation0]]
  $region73: #{tpu_custom_call.1} parent=0
    _
  %s9 = ssub.s32 1, %s7
  %s10 = scalar_select 0, %s9, %s7
  %11 = sst [smem:[#allocation2]] %s5
  $region1: #{tpu_custom_call.1} parent=0
    #allocation3 [shape = 'u8[65536]{0}', space=vmem, size = 0x10000, scoped, tag = 'input window, operand 0']
    #allocation4 [shape = 's32[2]{0}', space=sflag, size = 0x8, scoped, tag = 'scoped memory for tpu_custom_call.1']
    #allocation5 [shape = 's32[2]{0}', space=sflag, size = 0x8, scoped, tag = 'scoped memory for tpu_custom_call.1']
    #allocation6 [shape = 'u8[65536]{0}', space=vmem, size = 0x10000, scoped, tag = 'input window, operand 1']
    #allocation7 [shape = 's32[2]{0}', space=sflag, size = 0x8, scoped, tag = 'scoped memory for tpu_custom_call.1']
    #allocation8 [shape = 'u8[65536]{0}', space=vmem, size = 0x10000, scoped, tag = 'input window, operand 2, single buffered']
    #allocation9 [shape = 'u8[65536]{0}', space=vmem, size = 0x10000, scoped, tag = 'input window, operand 3, single buffered']
    #allocation10 [shape = 's32[1]{0}', space=sflag, size = 0x4, scoped, tag = 'scoped memory for tpu_custom_call.1']
    #allocation11 [shape = 'u8[1024]{0}', space=vmem, size = 0x400, scoped, tag = 'output window, operand 0']
    %12 = vsyncpa [#allocation4], 0
    %s13 = scalar_lea.sflag [#allocation4], 1
    %14 = vsyncpa %s13, 0
    %15 = vsyncpa [#allocation7], 0
    %s16 = scalar_lea.sflag [#allocation7], 1
    %17 = vsyncpa %s16, 0
    %18 = vsyncpa [#allocation10], 0
    %19 = vsyncpa [#allocation5], 0
    %s20 = scalar_lea.sflag [#allocation5], 1
    %21 = vsyncpa %s20, 0
    loop: start=0, step=1, limit=4
    $region2: #{tpu_custom_call.1} parent=1 // loop_pre_header
      _
    $region3: #{tpu_custom_call.1} parent=1 // loop_header
      %s23 = sphi 0, %s27
      %p24 = scmp.ge.s32.totalorder %s23, 4
      %s33 = sphi 0, %s35
      %s36 = sphi 0, %s33
      %s37 = sphi 0, %s36
      %s53 = sphi 0, %s37
      %s59 = sphi 0, %s61
      %s62 = sphi 0, %s59
      %s63 = sphi 0, %s62
      %s79 = sphi 0, %s63
      %s83 = sphi 0, %s83
      %s85 = sphi 0, %s83
      %s86 = sphi 0, %s85
      %s100 = sphi 0, %s86
      %s104 = sphi 0, %s104
      %s106 = sphi 0, %s104
      %s107 = sphi 0, %s106
      %s121 = sphi 0, %s107
      %s125 = sphi 0, %s125
      %s127 = sphi 0, %s125
      %s128 = sphi 0, %s127
      %s142 = sphi 0, %s128
      %s146 = sphi 0, %s146
      %s148 = sphi 0, %s146
      %s149 = sphi 0, %s148
      %s163 = sphi 0, %s149
      %s169 = sphi 0, %s171
      %s172 = sphi 0, %s169
      %s173 = sphi 0, %s172
      %s189 = sphi 0, %s173
    $region4: #{tpu_custom_call.1} parent=1 // loop_header_branch
      %26 = sbr.rel (%p24) target = $region8
    $region5: #{tpu_custom_call.1} parent=1 // loop_body
      %s28 = ssub.s32 %s23, 1
      %s29 = ssub.s32 %s23, 2
      %s30 = sadd.s32 %s23, 1
      %s31 = ssub.s32 %s23, %s30
      %p32 = scmp.eq.s32.totalorder %s31, 0
      %s34 = sadd.s32 %s33, 1
      %s35 = scalar_select %p32, %s33, %s34
      %p38 = pneg %p32
      %p39 = scmp.eq.s32.totalorder %s23, 1
      %p40 = por %p38, %p39
      %p41 = scmp.ne.s32.totalorder %s33, %s36
      %p42 = scmp.eq.s32.totalorder %s23, 0
      %p43 = por %p41, %p42
      %p44 = scmp.ne.s32.totalorder %s33, %s36
      %p45 = scmp.eq.s32.totalorder %s28, 1
      %p46 = por %p44, %p45
      %p47 = scmp.ne.s32.totalorder %s36, %s37
      %p48 = scmp.eq.s32.totalorder %s28, 0
      %p49 = por %p47, %p48
      %p50 = scmp.ne.s32.totalorder %s36, %s37
      %p51 = scmp.eq.s32.totalorder %s29, 1
      %p52 = por %p50, %p51
      %p54 = scmp.ne.s32.totalorder %s37, %s53
      %p55 = scmp.eq.s32.totalorder %s29, 0
      %p56 = por %p54, %p55
      %s57 = ssub.s32 %s23, %s30
      %p58 = scmp.eq.s32.totalorder %s57, 0
      %s60 = sadd.s32 %s59, 1
      %s61 = scalar_select %p58, %s59, %s60
      %p64 = pneg %p58
      %p65 = scmp.eq.s32.totalorder %s23, 1
      %p66 = por %p64, %p65
      %p67 = scmp.ne.s32.totalorder %s59, %s62
      %p68 = scmp.eq.s32.totalorder %s23, 0
      %p69 = por %p67, %p68
      %p70 = scmp.ne.s32.totalorder %s59, %s62
      %p71 = scmp.eq.s32.totalorder %s28, 1
      %p72 = por %p70, %p71
      %p73 = scmp.ne.s32.totalorder %s62, %s63
      %p74 = scmp.eq.s32.totalorder %s28, 0
      %p75 = por %p73, %p74
      %p76 = scmp.ne.s32.totalorder %s62, %s63
      %p77 = scmp.eq.s32.totalorder %s29, 1
      %p78 = por %p76, %p77
      %p80 = scmp.ne.s32.totalorder %s63, %s79
      %p81 = scmp.eq.s32.totalorder %s29, 0
      %p82 = por %p80, %p81
      %s84 = sadd.s32 %s83, 1
      %p87 = scmp.eq.s32.totalorder %s23, 1
      %p88 = scmp.ne.s32.totalorder %s83, %s85
      %p89 = scmp.eq.s32.totalorder %s23, 0
      %p90 = por %p88, %p89
      %p91 = scmp.ne.s32.totalorder %s83, %s85
      %p92 = scmp.eq.s32.totalorder %s28, 1
      %p93 = por %p91, %p92
      %p94 = scmp.ne.s32.totalorder %s85, %s86
      %p95 = scmp.eq.s32.totalorder %s28, 0
      %p96 = por %p94, %p95
      %p97 = scmp.ne.s32.totalorder %s85, %s86
      %p98 = scmp.eq.s32.totalorder %s29, 1
      %p99 = por %p97, %p98
      %p101 = scmp.ne.s32.totalorder %s86, %s100
      %p102 = scmp.eq.s32.totalorder %s29, 0
      %p103 = por %p101, %p102
      %s105 = sadd.s32 %s104, 1
      %p108 = scmp.eq.s32.totalorder %s23, 1
      %p109 = scmp.ne.s32.totalorder %s104, %s106
      %p110 = scmp.eq.s32.totalorder %s23, 0
      %p111 = por %p109, %p110
      %p112 = scmp.ne.s32.totalorder %s104, %s106
      %p113 = scmp.eq.s32.totalorder %s28, 1
      %p114 = por %p112, %p113
      %p115 = scmp.ne.s32.totalorder %s106, %s107
      %p116 = scmp.eq.s32.totalorder %s28, 0
      %p117 = por %p115, %p116
      %p118 = scmp.ne.s32.totalorder %s106, %s107
      %p119 = scmp.eq.s32.totalorder %s29, 1
      %p120 = por %p118, %p119
      %p122 = scmp.ne.s32.totalorder %s107, %s121
      %p123 = scmp.eq.s32.totalorder %s29, 0
      %p124 = por %p122, %p123
      %s126 = sadd.s32 %s125, 1
      %p129 = scmp.eq.s32.totalorder %s23, 1
      %p130 = scmp.ne.s32.totalorder %s125, %s127
      %p131 = scmp.eq.s32.totalorder %s23, 0
      %p132 = por %p130, %p131
      %p133 = scmp.ne.s32.totalorder %s125, %s127
      %p134 = scmp.eq.s32.totalorder %s28, 1
      %p135 = por %p133, %p134
      %p136 = scmp.ne.s32.totalorder %s127, %s128
      %p137 = scmp.eq.s32.totalorder %s28, 0
      %p138 = por %p136, %p137
      %p139 = scmp.ne.s32.totalorder %s127, %s128
      %p140 = scmp.eq.s32.totalorder %s29, 1
      %p141 = por %p139, %p140
      %p143 = scmp.ne.s32.totalorder %s128, %s142
      %p144 = scmp.eq.s32.totalorder %s29, 0
      %p145 = por %p143, %p144
      %s147 = sadd.s32 %s146, 1
      %p150 = scmp.eq.s32.totalorder %s23, 1
      %p151 = scmp.ne.s32.totalorder %s146, %s148
      %p152 = scmp.eq.s32.totalorder %s23, 0
      %p153 = por %p151, %p152
      %p154 = scmp.ne.s32.totalorder %s146, %s148
      %p155 = scmp.eq.s32.totalorder %s28, 1
      %p156 = por %p154, %p155
      %p157 = scmp.ne.s32.totalorder %s148, %s149
      %p158 = scmp.eq.s32.totalorder %s28, 0
      %p159 = por %p157, %p158
      %p160 = scmp.ne.s32.totalorder %s148, %s149
      %p161 = scmp.eq.s32.totalorder %s29, 1
      %p162 = por %p160, %p161
      %p164 = scmp.ne.s32.totalorder %s149, %s163
      %p165 = scmp.eq.s32.totalorder %s29, 0
      %p166 = por %p164, %p165
      %s167 = ssub.s32 %s23, %s30
      %p168 = scmp.eq.s32.totalorder %s167, 0
      %s170 = sadd.s32 %s169, 1
      %s171 = scalar_select %p168, %s169, %s170
      %p174 = pneg %p168
      %p175 = scmp.eq.s32.totalorder %s23, 1
      %p176 = por %p174, %p175
      %p177 = scmp.ne.s32.totalorder %s169, %s172
      %p178 = scmp.eq.s32.totalorder %s23, 0
      %p179 = por %p177, %p178
      %p180 = scmp.ne.s32.totalorder %s169, %s172
      %p181 = scmp.eq.s32.totalorder %s28, 1
      %p182 = por %p180, %p181
      %p183 = scmp.ne.s32.totalorder %s172, %s173
      %p184 = scmp.eq.s32.totalorder %s28, 0
      %p185 = por %p183, %p184
      %p186 = scmp.ne.s32.totalorder %s172, %s173
      %p187 = scmp.eq.s32.totalorder %s29, 1
      %p188 = por %p186, %p187
      %p190 = scmp.ne.s32.totalorder %s173, %s189
      %p191 = scmp.eq.s32.totalorder %s29, 0
      %p192 = por %p190, %p191
      %p193 = scmp.le.s32.totalorder 1, %s23
      %p194 = scmp.lt.s32.totalorder %s23, 3
      %p195 = pnand %p193, %p194
      %p196 = pneg %p195
      // Predicated region
      $region9: #{tpu_custom_call.1} parent=5 // pred_check
        _
      $region10: #{tpu_custom_call.1} parent=5 // pred_check_branch
        %198 = sbr.rel (%p195) target = $region12
      $region11: #{tpu_custom_call.1} parent=5 // pred_region
        %s199 = ssub.s32 %s23, 1
        // Predicated region
        $region13: #{tpu_custom_call.1} parent=11 // pred_check
          %p200 = pneg %p96
        $region14: #{tpu_custom_call.1} parent=11 // pred_check_branch
          %202 = sbr.rel (%p200) target = $region16
        $region15: #{tpu_custom_call.1} parent=11 // pred_region
          %204 = vsyncadd [#allocation7], 0
          %s205 = sshll.u32 %s2, 4
          %s206 = int_to_ptr.hbm [resolvable:$true] %s205
          %s207 = sshll.u32 [#allocation8], 4
          %s208 = int_to_ptr.vmem [resolvable:$true] %s207
          %213 = dma.hbm_to_vmem [thread:$0]  %s206, 2048, %s208, [#allocation7], 128, 128, 8
        $region16: #{tpu_custom_call.1} parent=11 // pred_fallthru
          _
        // Predicated region
        $region17: #{tpu_custom_call.1} parent=11 // pred_check
          %p214 = pneg %p117
        $region18: #{tpu_custom_call.1} parent=11 // pred_check_branch
          %216 = sbr.rel (%p214) target = $region20
        $region19: #{tpu_custom_call.1} parent=11 // pred_region
          %218 = vsyncadd [#allocation10], 0
          %s219 = sshll.u32 %s3, 4
          %s220 = int_to_ptr.hbm [resolvable:$true] %s219
          %s221 = sshll.u32 [#allocation9], 4
          %s222 = int_to_ptr.vmem [resolvable:$true] %s221
          %227 = dma.hbm_to_vmem [thread:$0]  %s220, 2048, %s222, [#allocation10], 128, 128, 8
        $region20: #{tpu_custom_call.1} parent=11 // pred_fallthru
          _
        // Predicated region
        $region21: #{tpu_custom_call.1} parent=11 // pred_check
          %p228 = pneg %p138
        $region22: #{tpu_custom_call.1} parent=11 // pred_check_branch
          %230 = sbr.rel (%p228) target = $region24
        $region23: #{tpu_custom_call.1} parent=11 // pred_region
          _
        $region24: #{tpu_custom_call.1} parent=11 // pred_fallthru
          _
        // Predicated region
        $region25: #{tpu_custom_call.1} parent=11 // pred_check
          %p231 = pneg %p159
        $region26: #{tpu_custom_call.1} parent=11 // pred_check_branch
          %233 = sbr.rel (%p231) target = $region28
        $region27: #{tpu_custom_call.1} parent=11 // pred_region
          _
        $region28: #{tpu_custom_call.1} parent=11 // pred_fallthru
          _
      $region12: #{tpu_custom_call.1} parent=5 // pred_fallthru
        _
      %p234 = scmp.lt.s32.totalorder %s23, 2
      // Predicated region
      $region29: #{tpu_custom_call.1} parent=5 // pred_check
        %p235 = pneg %p234
      $region30: #{tpu_custom_call.1} parent=5 // pred_check_branch
        %237 = sbr.rel (%p235) target = $region32
      $region31: #{tpu_custom_call.1} parent=5 // pred_region
        // Predicated region
        $region33: #{tpu_custom_call.1} parent=31 // pred_check
          %p238 = pneg %p43
        $region34: #{tpu_custom_call.1} parent=31 // pred_check_branch
          %240 = sbr.rel (%p238) target = $region36
        $region35: #{tpu_custom_call.1} parent=31 // pred_region
          %s241 = sand.u32 %s33, 1
          %s242 = scalar_lea.sflag [#allocation4], %s241
          %s243 = sand.u32 %s33, 1
          %s244 = smul.addr %s243, 64
          %s245 = scalar_lea.vmem [#allocation3], %s244
          %s246 = smul.u32 16, %s23
          %248 = vsyncadd %s242, 0
          %s249 = smul.addr %s246, 4
          %s250 = scalar_lea.hbm %s0, %s249
          %s251 = sshll.u32 %s250, 4
          %s252 = int_to_ptr.hbm [resolvable:$true] %s251
          %s253 = sshll.u32 %s245, 4
          %s254 = int_to_ptr.vmem [resolvable:$true] %s253
          %259 = dma.hbm_to_vmem [thread:$0]  %s252, 1024, %s254, %s242, 64, 64, 4
        $region36: #{tpu_custom_call.1} parent=31 // pred_fallthru
          _
        // Predicated region
        $region37: #{tpu_custom_call.1} parent=31 // pred_check
          %p260 = pneg %p69
        $region38: #{tpu_custom_call.1} parent=31 // pred_check_branch
          %262 = sbr.rel (%p260) target = $region40
        $region39: #{tpu_custom_call.1} parent=31 // pred_region
          %s263 = sand.u32 %s23, 1
          %s264 = scalar_lea.sflag [#allocation7], %s263
          %s265 = sand.u32 %s59, 1
          %s266 = smul.addr %s265, 64
          %s267 = scalar_lea.vmem [#allocation6], %s266
          %s268 = smul.u32 16, %s23
          %270 = vsyncadd %s264, 0
          %s271 = smul.addr %s268, 4
          %s272 = scalar_lea.hbm %s1, %s271
          %s273 = sshll.u32 %s272, 4
          %s274 = int_to_ptr.hbm [resolvable:$true] %s273
          %s275 = sshll.u32 %s267, 4
          %s276 = int_to_ptr.vmem [resolvable:$true] %s275
          %281 = dma.hbm_to_vmem [thread:$0]  %s274, 1024, %s276, %s264, 64, 64, 4
        $region40: #{tpu_custom_call.1} parent=31 // pred_fallthru
          _
      $region32: #{tpu_custom_call.1} parent=5 // pred_fallthru
        _
      %p282 = scmp.le.s32.totalorder 1, %s23
      %p283 = scmp.lt.s32.totalorder %s23, 3
      %p284 = pnand %p282, %p283
      %p285 = pneg %p284
      // Predicated region
      $region41: #{tpu_custom_call.1} parent=5 // pred_check
        _
      $region42: #{tpu_custom_call.1} parent=5 // pred_check_branch
        %287 = sbr.rel (%p284) target = $region44
      $region43: #{tpu_custom_call.1} parent=5 // pred_region
        %s288 = ssub.s32 %s23, 1
        %s289 = sand.u32 %s36, 1
        %s290 = scalar_lea.sflag [#allocation4], %s289
        %s291 = sand.u32 %s36, 1
        %s292 = smul.addr %s291, 64
        %s293 = scalar_lea.vmem [#allocation3], %s292
        // Predicated region
        $region45: #{tpu_custom_call.1} parent=43 // pred_check
          %p294 = pneg %p49
        $region46: #{tpu_custom_call.1} parent=43 // pred_check_branch
          %296 = sbr.rel (%p294) target = $region48
        $region47: #{tpu_custom_call.1} parent=43 // pred_region
          %298 = dma.done %s290, 1024
        $region48: #{tpu_custom_call.1} parent=43 // pred_fallthru
          _
        %s299 = sand.u32 %s28, 1
        %s300 = scalar_lea.sflag [#allocation7], %s299
        %s301 = sand.u32 %s62, 1
        %s302 = smul.addr %s301, 64
        %s303 = scalar_lea.vmem [#allocation6], %s302
        // Predicated region
        $region49: #{tpu_custom_call.1} parent=43 // pred_check
          %p304 = pneg %p75
        $region50: #{tpu_custom_call.1} parent=43 // pred_check_branch
          %306 = sbr.rel (%p304) target = $region52
        $region51: #{tpu_custom_call.1} parent=43 // pred_region
          %308 = dma.done %s300, 1024
        $region52: #{tpu_custom_call.1} parent=43 // pred_fallthru
          _
        // Predicated region
        $region53: #{tpu_custom_call.1} parent=43 // pred_check
          %p309 = pneg %p96
        $region54: #{tpu_custom_call.1} parent=43 // pred_check_branch
          %311 = sbr.rel (%p309) target = $region56
        $region55: #{tpu_custom_call.1} parent=43 // pred_region
          %313 = dma.done [#allocation7], 2048
        $region56: #{tpu_custom_call.1} parent=43 // pred_fallthru
          _
        // Predicated region
        $region57: #{tpu_custom_call.1} parent=43 // pred_check
          %p314 = pneg %p117
        $region58: #{tpu_custom_call.1} parent=43 // pred_check_branch
          %316 = sbr.rel (%p314) target = $region60
        $region59: #{tpu_custom_call.1} parent=43 // pred_region
          %318 = dma.done [#allocation10], 2048
        $region60: #{tpu_custom_call.1} parent=43 // pred_fallthru
          _
        %s319 = sand.u32 %s36, 1
        %s320 = scalar_lea.sflag [#allocation4], %s319
        %s321 = sand.u32 %s36, 1
        %s322 = smul.addr %s321, 64
        %s323 = scalar_lea.vmem [#allocation3], %s322
        %p324 = pneg %p49
        %p325 = pneg %p46
        %s326 = sand.u32 %s28, 1
        %s327 = scalar_lea.sflag [#allocation7], %s326
        %s328 = sand.u32 %s62, 1
        %s329 = smul.addr %s328, 64
        %s330 = scalar_lea.vmem [#allocation6], %s329
        %p331 = pneg %p75
        %p332 = pneg %p72
        %p333 = pneg %p96
        %p334 = pneg %p93
        %p335 = pneg %p117
        %p336 = pneg %p114
        %p337 = pneg %p138
        %p338 = pneg %p135
        %p339 = pneg %p159
        %p340 = pneg %p156
        %p341 = pneg %p185
        %p342 = pneg %p182
        %s343 = sand.u32 %s172, 1
        %s344 = scalar_lea.sflag [#allocation5], %s343
        %s345 = sand.u32 %s172, 1
        %s346 = scalar_lea.vmem [#allocation11], %s345
        %s347 = smul.u32 16, %s28
        %s348 = smul.u32 16, %s28
        %v349 = vld [vmem:[%s293] sm:$0xf]
        %v350 = vld [vmem:[%s293 + $0x4] sm:$0xf]
        %v351 = vld [vmem:[%s293 + $0x8] sm:$0xf]
        %v352 = vld [vmem:[%s293 + $0xc] sm:$0xf]
        %v353 = vld [vmem:[%s293 + $0x10] sm:$0xf]
        %v354 = vld [vmem:[%s293 + $0x14] sm:$0xf]
        %v355 = vld [vmem:[%s293 + $0x18] sm:$0xf]
        %v356 = vld [vmem:[%s293 + $0x1c] sm:$0xf]
        %v357 = vld [vmem:[%s293 + $0x20] sm:$0xf]
        %v358 = vld [vmem:[%s293 + $0x24] sm:$0xf]
        %v359 = vld [vmem:[%s293 + $0x28] sm:$0xf]
        %v360 = vld [vmem:[%s293 + $0x2c] sm:$0xf]
        %v361 = vld [vmem:[%s293 + $0x30] sm:$0xf]
        %v362 = vld [vmem:[%s293 + $0x34] sm:$0xf]
        %v363 = vld [vmem:[%s293 + $0x38] sm:$0xf]
        %v364 = vld [vmem:[%s293 + $0x3c] sm:$0xf]
        %v365 = vld [vmem:[#allocation8] sm:$0xff]
        %v366 = vld [vmem:[#allocation8 + $0x8] sm:$0xff]
        %v367 = vld [vmem:[#allocation8 + $0x10] sm:$0xff]
        %v368 = vld [vmem:[#allocation8 + $0x18] sm:$0xff]
        %v369 = vld [vmem:[#allocation8 + $0x20] sm:$0xff]
        %v370 = vld [vmem:[#allocation8 + $0x28] sm:$0xff]
        %v371 = vld [vmem:[#allocation8 + $0x30] sm:$0xff]
        %v372 = vld [vmem:[#allocation8 + $0x38] sm:$0xff]
        %v373 = vld [vmem:[#allocation8 + $0x40] sm:$0xff]
        %v374 = vld [vmem:[#allocation8 + $0x48] sm:$0xff]
        %v375 = vld [vmem:[#allocation8 + $0x50] sm:$0xff]
        %v376 = vld [vmem:[#allocation8 + $0x58] sm:$0xff]
        %v377 = vld [vmem:[#allocation8 + $0x60] sm:$0xff]
        %v378 = vld [vmem:[#allocation8 + $0x68] sm:$0xff]
        %v379 = vld [vmem:[#allocation8 + $0x70] sm:$0xff]
        %v380 = vld [vmem:[#allocation8 + $0x78] sm:$0xff]
        %v381 = vld [vmem:[%s303] sm:$0xf]
        %v382 = vld [vmem:[%s303 + $0x4] sm:$0xf]
        %v383 = vld [vmem:[%s303 + $0x8] sm:$0xf]
        %v384 = vld [vmem:[%s303 + $0xc] sm:$0xf]
        %v385 = vld [vmem:[%s303 + $0x10] sm:$0xf]
        %v386 = vld [vmem:[%s303 + $0x14] sm:$0xf]
        %v387 = vld [vmem:[%s303 + $0x18] sm:$0xf]
        %v388 = vld [vmem:[%s303 + $0x1c] sm:$0xf]
        %v389 = vld [vmem:[%s303 + $0x20] sm:$0xf]
        %v390 = vld [vmem:[%s303 + $0x24] sm:$0xf]
        %v391 = vld [vmem:[%s303 + $0x28] sm:$0xf]
        %v392 = vld [vmem:[%s303 + $0x2c] sm:$0xf]
        %v393 = vld [vmem:[%s303 + $0x30] sm:$0xf]
        %v394 = vld [vmem:[%s303 + $0x34] sm:$0xf]
        %v395 = vld [vmem:[%s303 + $0x38] sm:$0xf]
        %v396 = vld [vmem:[%s303 + $0x3c] sm:$0xf]
        %v397 = vld [vmem:[#allocation9] sm:$0xff]
        %v398 = vld [vmem:[#allocation9 + $0x8] sm:$0xff]
        %v399 = vld [vmem:[#allocation9 + $0x10] sm:$0xff]
        %v400 = vld [vmem:[#allocation9 + $0x18] sm:$0xff]
        %v401 = vld [vmem:[#allocation9 + $0x20] sm:$0xff]
        %v402 = vld [vmem:[#allocation9 + $0x28] sm:$0xff]
        %v403 = vld [vmem:[#allocation9 + $0x30] sm:$0xff]
        %v404 = vld [vmem:[#allocation9 + $0x38] sm:$0xff]
        %v405 = vld [vmem:[#allocation9 + $0x40] sm:$0xff]
        %v406 = vld [vmem:[#allocation9 + $0x48] sm:$0xff]
        %v407 = vld [vmem:[#allocation9 + $0x50] sm:$0xff]
        %v408 = vld [vmem:[#allocation9 + $0x58] sm:$0xff]
        %v409 = vld [vmem:[#allocation9 + $0x60] sm:$0xff]
        %v410 = vld [vmem:[#allocation9 + $0x68] sm:$0xff]
        %v411 = vld [vmem:[#allocation9 + $0x70] sm:$0xff]
        %v412 = vld [vmem:[#allocation9 + $0x78] sm:$0xff]
        %v429 = vunpack.c.l.b16 %v381
        %v430 = vunpack.c.l.b16 %v382
        %v431 = vunpack.c.l.b16 %v383
        %v432 = vunpack.c.l.b16 %v384
        %v433 = vunpack.c.l.b16 %v385
        %v434 = vunpack.c.l.b16 %v386
        %v435 = vunpack.c.l.b16 %v387
        %v436 = vunpack.c.l.b16 %v388
        %v437 = vunpack.c.l.b16 %v389
        %v438 = vunpack.c.l.b16 %v390
        %v439 = vunpack.c.l.b16 %v391
        %v440 = vunpack.c.l.b16 %v392
        %v441 = vunpack.c.l.b16 %v393
        %v442 = vunpack.c.l.b16 %v394
        %v443 = vunpack.c.l.b16 %v395
        %v444 = vunpack.c.l.b16 %v396
        %v445 = vpack.c.b16 %v430, %v429
        %v446 = vpack.c.b16 %v432, %v431
        %v447 = vpack.c.b16 %v434, %v433
        %v448 = vpack.c.b16 %v436, %v435
        %v449 = vpack.c.b16 %v438, %v437
        %v450 = vpack.c.b16 %v440, %v439
        %v451 = vpack.c.b16 %v442, %v441
        %v452 = vpack.c.b16 %v444, %v443
        %v477 = vunpack.c.l.b16 %v397
        %v478 = vunpack.c.h.b16 %v397
        %v479 = vunpack.c.l.b16 %v398
        %v480 = vunpack.c.h.b16 %v398
        %v481 = vunpack.c.l.b16 %v399
        %v482 = vunpack.c.h.b16 %v399
        %v483 = vunpack.c.l.b16 %v400
        %v484 = vunpack.c.h.b16 %v400
        %v485 = vunpack.c.l.b16 %v401
        %v486 = vunpack.c.h.b16 %v401
        %v487 = vunpack.c.l.b16 %v402
        %v488 = vunpack.c.h.b16 %v402
        %v489 = vunpack.c.l.b16 %v403
        %v490 = vunpack.c.h.b16 %v403
        %v491 = vunpack.c.l.b16 %v404
        %v492 = vunpack.c.h.b16 %v404
        %v493 = vunpack.c.l.b16 %v405
        %v494 = vunpack.c.h.b16 %v405
        %v495 = vunpack.c.l.b16 %v406
        %v496 = vunpack.c.h.b16 %v406
        %v497 = vunpack.c.l.b16 %v407
        %v498 = vunpack.c.h.b16 %v407
        %v499 = vunpack.c.l.b16 %v408
        %v500 = vunpack.c.h.b16 %v408
        %v501 = vunpack.c.l.b16 %v409
        %v502 = vunpack.c.h.b16 %v409
        %v503 = vunpack.c.l.b16 %v410
        %v504 = vunpack.c.h.b16 %v410
        %v505 = vunpack.c.l.b16 %v411
        %v506 = vunpack.c.h.b16 %v411
        %v507 = vunpack.c.l.b16 %v412
        %v508 = vunpack.c.h.b16 %v412
        %v509 = vpack.c.b16 %v479, %v477
        %v510 = vpack.c.b16 %v480, %v478
        %v511 = vpack.c.b16 %v483, %v481
        %v512 = vpack.c.b16 %v484, %v482
        %v513 = vpack.c.b16 %v487, %v485
        %v514 = vpack.c.b16 %v488, %v486
        %v515 = vpack.c.b16 %v491, %v489
        %v516 = vpack.c.b16 %v492, %v490
        %v517 = vpack.c.b16 %v495, %v493
        %v518 = vpack.c.b16 %v496, %v494
        %v519 = vpack.c.b16 %v499, %v497
        %v520 = vpack.c.b16 %v500, %v498
        %v521 = vpack.c.b16 %v503, %v501
        %v522 = vpack.c.b16 %v504, %v502
        %v523 = vpack.c.b16 %v507, %v505
        %v524 = vpack.c.b16 %v508, %v506
        %541 = vmatpush.bf16.msra.mxu0 %v523
        %542 = vmatpush.bf16.msra.mxu0 %v521
        %543 = vmatpush.bf16.msra.mxu0 %v519
        %544 = vmatpush.bf16.msra.mxu0 %v517
        %545 = vmatpush.bf16.msra.mxu0 %v515
        %546 = vmatpush.bf16.msra.mxu0 %v513
        %547 = vmatpush.bf16.msra.mxu0 %v511
        %548 = vmatpush.bf16.msra.mxu0 %v509
        %549 = vmatmul.bf16.gmra.mxu0 %v445
        %v550 = vpop.f32.mrf.mxu0
        %v551 = vadd.f32 0.0, %v550
        %v552 = vpop.f32.mrf.mxu0
        %v553 = vadd.f32 0.0, %v552
        %554 = vmatmul.bf16.gmra.mxu0 %v446
        %v555 = vpop.f32.mrf.mxu0
        %v556 = vadd.f32 0.0, %v555
        %v557 = vpop.f32.mrf.mxu0
        %v558 = vadd.f32 0.0, %v557
        %559 = vmatmul.bf16.gmra.mxu0 %v447
        %v560 = vpop.f32.mrf.mxu0
        %v561 = vadd.f32 0.0, %v560
        %v562 = vpop.f32.mrf.mxu0
        %v563 = vadd.f32 0.0, %v562
        %564 = vmatmul.bf16.gmra.mxu0 %v448
        %v565 = vpop.f32.mrf.mxu0
        %v566 = vadd.f32 0.0, %v565
        %v567 = vpop.f32.mrf.mxu0
        %v568 = vadd.f32 0.0, %v567
        %569 = vmatmul.bf16.gmra.mxu0 %v449
        %v570 = vpop.f32.mrf.mxu0
        %v571 = vadd.f32 0.0, %v570
        %v572 = vpop.f32.mrf.mxu0
        %v573 = vadd.f32 0.0, %v572
        %574 = vmatmul.bf16.gmra.mxu0 %v450
        %v575 = vpop.f32.mrf.mxu0
        %v576 = vadd.f32 0.0, %v575
        %v577 = vpop.f32.mrf.mxu0
        %v578 = vadd.f32 0.0, %v577
        %579 = vmatmul.bf16.gmra.mxu0 %v451
        %v580 = vpop.f32.mrf.mxu0
        %v581 = vadd.f32 0.0, %v580
        %v582 = vpop.f32.mrf.mxu0
        %v583 = vadd.f32 0.0, %v582
        %584 = vmatmul.bf16.gmra.mxu0 %v452
        %v585 = vpop.f32.mrf.mxu0
        %v586 = vadd.f32 0.0, %v585
        %v587 = vpop.f32.mrf.mxu0
        %v588 = vadd.f32 0.0, %v587
        %589 = vdwg.mxu0
        %590 = vmatpush.bf16.msra.mxu0 %v524
        %591 = vmatpush.bf16.msra.mxu0 %v522
        %592 = vmatpush.bf16.msra.mxu0 %v520
        %593 = vmatpush.bf16.msra.mxu0 %v518
        %594 = vmatpush.bf16.msra.mxu0 %v516
        %595 = vmatpush.bf16.msra.mxu0 %v514
        %596 = vmatpush.bf16.msra.mxu0 %v512
        %597 = vmatpush.bf16.msra.mxu0 %v510
        %598 = vmatmul.bf16.gmra.mxu0 %v445
        %v599 = vpop.f32.mrf.mxu0
        %v600 = vadd.f32 0.0, %v599
        %v601 = vpop.f32.mrf.mxu0
        %v602 = vadd.f32 0.0, %v601
        %603 = vmatmul.bf16.gmra.mxu0 %v446
        %v604 = vpop.f32.mrf.mxu0
        %v605 = vadd.f32 0.0, %v604
        %v606 = vpop.f32.mrf.mxu0
        %v607 = vadd.f32 0.0, %v606
        %608 = vmatmul.bf16.gmra.mxu0 %v447
        %v609 = vpop.f32.mrf.mxu0
        %v610 = vadd.f32 0.0, %v609
        %v611 = vpop.f32.mrf.mxu0
        %v612 = vadd.f32 0.0, %v611
        %613 = vmatmul.bf16.gmra.mxu0 %v448
        %v614 = vpop.f32.mrf.mxu0
        %v615 = vadd.f32 0.0, %v614
        %v616 = vpop.f32.mrf.mxu0
        %v617 = vadd.f32 0.0, %v616
        %618 = vmatmul.bf16.gmra.mxu0 %v449
        %v619 = vpop.f32.mrf.mxu0
        %v620 = vadd.f32 0.0, %v619
        %v621 = vpop.f32.mrf.mxu0
        %v622 = vadd.f32 0.0, %v621
        %623 = vmatmul.bf16.gmra.mxu0 %v450
        %v624 = vpop.f32.mrf.mxu0
        %v625 = vadd.f32 0.0, %v624
        %v626 = vpop.f32.mrf.mxu0
        %v627 = vadd.f32 0.0, %v626
        %628 = vmatmul.bf16.gmra.mxu0 %v451
        %v629 = vpop.f32.mrf.mxu0
        %v630 = vadd.f32 0.0, %v629
        %v631 = vpop.f32.mrf.mxu0
        %v632 = vadd.f32 0.0, %v631
        %633 = vmatmul.bf16.gmra.mxu0 %v452
        %v634 = vpop.f32.mrf.mxu0
        %v635 = vadd.f32 0.0, %v634
        %v636 = vpop.f32.mrf.mxu0
        %v637 = vadd.f32 0.0, %v636
        %638 = vdwg.mxu0
        %v655 = vunpack.c.l.b16 %v349
        %v656 = vunpack.c.l.b16 %v350
        %v657 = vunpack.c.l.b16 %v351
        %v658 = vunpack.c.l.b16 %v352
        %v659 = vunpack.c.l.b16 %v353
        %v660 = vunpack.c.l.b16 %v354
        %v661 = vunpack.c.l.b16 %v355
        %v662 = vunpack.c.l.b16 %v356
        %v663 = vunpack.c.l.b16 %v357
        %v664 = vunpack.c.l.b16 %v358
        %v665 = vunpack.c.l.b16 %v359
        %v666 = vunpack.c.l.b16 %v360
        %v667 = vunpack.c.l.b16 %v361
        %v668 = vunpack.c.l.b16 %v362
        %v669 = vunpack.c.l.b16 %v363
        %v670 = vunpack.c.l.b16 %v364
        %v671 = vpack.c.b16 %v656, %v655
        %v672 = vpack.c.b16 %v658, %v657
        %v673 = vpack.c.b16 %v660, %v659
        %v674 = vpack.c.b16 %v662, %v661
        %v675 = vpack.c.b16 %v664, %v663
        %v676 = vpack.c.b16 %v666, %v665
        %v677 = vpack.c.b16 %v668, %v667
        %v678 = vpack.c.b16 %v670, %v669
        %v703 = vunpack.c.l.b16 %v365
        %v704 = vunpack.c.h.b16 %v365
        %v705 = vunpack.c.l.b16 %v366
        %v706 = vunpack.c.h.b16 %v366
        %v707 = vunpack.c.l.b16 %v367
        %v708 = vunpack.c.h.b16 %v367
        %v709 = vunpack.c.l.b16 %v368
        %v710 = vunpack.c.h.b16 %v368
        %v711 = vunpack.c.l.b16 %v369
        %v712 = vunpack.c.h.b16 %v369
        %v713 = vunpack.c.l.b16 %v370
        %v714 = vunpack.c.h.b16 %v370
        %v715 = vunpack.c.l.b16 %v371
        %v716 = vunpack.c.h.b16 %v371
        %v717 = vunpack.c.l.b16 %v372
        %v718 = vunpack.c.h.b16 %v372
        %v719 = vunpack.c.l.b16 %v373
        %v720 = vunpack.c.h.b16 %v373
        %v721 = vunpack.c.l.b16 %v374
        %v722 = vunpack.c.h.b16 %v374
        %v723 = vunpack.c.l.b16 %v375
        %v724 = vunpack.c.h.b16 %v375
        %v725 = vunpack.c.l.b16 %v376
        %v726 = vunpack.c.h.b16 %v376
        %v727 = vunpack.c.l.b16 %v377
        %v728 = vunpack.c.h.b16 %v377
        %v729 = vunpack.c.l.b16 %v378
        %v730 = vunpack.c.h.b16 %v378
        %v731 = vunpack.c.l.b16 %v379
        %v732 = vunpack.c.h.b16 %v379
        %v733 = vunpack.c.l.b16 %v380
        %v734 = vunpack.c.h.b16 %v380
        %v735 = vpack.c.b16 %v705, %v703
        %v736 = vpack.c.b16 %v706, %v704
        %v737 = vpack.c.b16 %v709, %v707
        %v738 = vpack.c.b16 %v710, %v708
        %v739 = vpack.c.b16 %v713, %v711
        %v740 = vpack.c.b16 %v714, %v712
        %v741 = vpack.c.b16 %v717, %v715
        %v742 = vpack.c.b16 %v718, %v716
        %v743 = vpack.c.b16 %v721, %v719
        %v744 = vpack.c.b16 %v722, %v720
        %v745 = vpack.c.b16 %v725, %v723
        %v746 = vpack.c.b16 %v726, %v724
        %v747 = vpack.c.b16 %v729, %v727
        %v748 = vpack.c.b16 %v730, %v728
        %v749 = vpack.c.b16 %v733, %v731
        %v750 = vpack.c.b16 %v734, %v732
        %767 = vmatpush.bf16.msra.mxu0 %v749
        %768 = vmatpush.bf16.msra.mxu0 %v747
        %769 = vmatpush.bf16.msra.mxu0 %v745
        %770 = vmatpush.bf16.msra.mxu0 %v743
        %771 = vmatpush.bf16.msra.mxu0 %v741
        %772 = vmatpush.bf16.msra.mxu0 %v739
        %773 = vmatpush.bf16.msra.mxu0 %v737
        %774 = vmatpush.bf16.msra.mxu0 %v735
        %775 = vmatmul.bf16.gmra.mxu0 %v671
        %v776 = vpop.f32.mrf.mxu0
        %v777 = vadd.f32 %v551, %v776
        %v778 = vpop.f32.mrf.mxu0
        %v779 = vadd.f32 %v553, %v778
        %780 = vmatmul.bf16.gmra.mxu0 %v672
        %v781 = vpop.f32.mrf.mxu0
        %v782 = vadd.f32 %v556, %v781
        %v783 = vpop.f32.mrf.mxu0
        %v784 = vadd.f32 %v558, %v783
        %785 = vmatmul.bf16.gmra.mxu0 %v673
        %v786 = vpop.f32.mrf.mxu0
        %v787 = vadd.f32 %v561, %v786
        %v788 = vpop.f32.mrf.mxu0
        %v789 = vadd.f32 %v563, %v788
        %790 = vmatmul.bf16.gmra.mxu0 %v674
        %v791 = vpop.f32.mrf.mxu0
        %v792 = vadd.f32 %v566, %v791
        %v793 = vpop.f32.mrf.mxu0
        %v794 = vadd.f32 %v568, %v793
        %795 = vmatmul.bf16.gmra.mxu0 %v675
        %v796 = vpop.f32.mrf.mxu0
        %v797 = vadd.f32 %v571, %v796
        %v798 = vpop.f32.mrf.mxu0
        %v799 = vadd.f32 %v573, %v798
        %800 = vmatmul.bf16.gmra.mxu0 %v676
        %v801 = vpop.f32.mrf.mxu0
        %v802 = vadd.f32 %v576, %v801
        %v803 = vpop.f32.mrf.mxu0
        %v804 = vadd.f32 %v578, %v803
        %805 = vmatmul.bf16.gmra.mxu0 %v677
        %v806 = vpop.f32.mrf.mxu0
        %v807 = vadd.f32 %v581, %v806
        %v808 = vpop.f32.mrf.mxu0
        %v809 = vadd.f32 %v583, %v808
        %810 = vmatmul.bf16.gmra.mxu0 %v678
        %v811 = vpop.f32.mrf.mxu0
        %v812 = vadd.f32 %v586, %v811
        %v813 = vpop.f32.mrf.mxu0
        %v814 = vadd.f32 %v588, %v813
        %815 = vdwg.mxu0
        %816 = vmatpush.bf16.msra.mxu0 %v750
        %817 = vmatpush.bf16.msra.mxu0 %v748
        %818 = vmatpush.bf16.msra.mxu0 %v746
        %819 = vmatpush.bf16.msra.mxu0 %v744
        %820 = vmatpush.bf16.msra.mxu0 %v742
        %821 = vmatpush.bf16.msra.mxu0 %v740
        %822 = vmatpush.bf16.msra.mxu0 %v738
        %823 = vmatpush.bf16.msra.mxu0 %v736
        %824 = vmatmul.bf16.gmra.mxu0 %v671
        %v825 = vpop.f32.mrf.mxu0
        %v826 = vadd.f32 %v600, %v825
        %v827 = vpop.f32.mrf.mxu0
        %v828 = vadd.f32 %v602, %v827
        %829 = vmatmul.bf16.gmra.mxu0 %v672
        %v830 = vpop.f32.mrf.mxu0
        %v831 = vadd.f32 %v605, %v830
        %v832 = vpop.f32.mrf.mxu0
        %v833 = vadd.f32 %v607, %v832
        %834 = vmatmul.bf16.gmra.mxu0 %v673
        %v835 = vpop.f32.mrf.mxu0
        %v836 = vadd.f32 %v610, %v835
        %v837 = vpop.f32.mrf.mxu0
        %v838 = vadd.f32 %v612, %v837
        %839 = vmatmul.bf16.gmra.mxu0 %v674
        %v840 = vpop.f32.mrf.mxu0
        %v841 = vadd.f32 %v615, %v840
        %v842 = vpop.f32.mrf.mxu0
        %v843 = vadd.f32 %v617, %v842
        %844 = vmatmul.bf16.gmra.mxu0 %v675
        %v845 = vpop.f32.mrf.mxu0
        %v846 = vadd.f32 %v620, %v845
        %v847 = vpop.f32.mrf.mxu0
        %v848 = vadd.f32 %v622, %v847
        %849 = vmatmul.bf16.gmra.mxu0 %v676
        %v850 = vpop.f32.mrf.mxu0
        %v851 = vadd.f32 %v625, %v850
        %v852 = vpop.f32.mrf.mxu0
        %v853 = vadd.f32 %v627, %v852
        %854 = vmatmul.bf16.gmra.mxu0 %v677
        %v855 = vpop.f32.mrf.mxu0
        %v856 = vadd.f32 %v630, %v855
        %v857 = vpop.f32.mrf.mxu0
        %v858 = vadd.f32 %v632, %v857
        %859 = vmatmul.bf16.gmra.mxu0 %v678
        %v860 = vpop.f32.mrf.mxu0
        %v861 = vadd.f32 %v635, %v860
        %v862 = vpop.f32.mrf.mxu0
        %v863 = vadd.f32 %v637, %v862
        %864 = vdwg.mxu0
        %v865 = vld [vmem:[%s4] sm:$0x3]
        %v867 = vperm.slane %v865, 0
        %v868 = vperm.slane %v865, 1
        %v871 = vadd.f32 %v777, %v867
        %v872 = vadd.f32 %v826, %v868
        %v873 = vadd.f32 %v779, %v867
        %v874 = vadd.f32 %v828, %v868
        %v875 = vadd.f32 %v782, %v867
        %v876 = vadd.f32 %v831, %v868
        %v877 = vadd.f32 %v784, %v867
        %v878 = vadd.f32 %v833, %v868
        %v879 = vadd.f32 %v787, %v867
        %v880 = vadd.f32 %v836, %v868
        %v881 = vadd.f32 %v789, %v867
        %v882 = vadd.f32 %v838, %v868
        %v883 = vadd.f32 %v792, %v867
        %v884 = vadd.f32 %v841, %v868
        %v885 = vadd.f32 %v794, %v867
        %v886 = vadd.f32 %v843, %v868
        %v887 = vadd.f32 %v797, %v867
        %v888 = vadd.f32 %v846, %v868
        %v889 = vadd.f32 %v799, %v867
        %v890 = vadd.f32 %v848, %v868
        %v891 = vadd.f32 %v802, %v867
        %v892 = vadd.f32 %v851, %v868
        %v893 = vadd.f32 %v804, %v867
        %v894 = vadd.f32 %v853, %v868
        %v895 = vadd.f32 %v807, %v867
        %v896 = vadd.f32 %v856, %v868
        %v897 = vadd.f32 %v809, %v867
        %v898 = vadd.f32 %v858, %v868
        %v899 = vadd.f32 %v812, %v867
        %v900 = vadd.f32 %v861, %v868
        %v901 = vadd.f32 %v814, %v867
        %v902 = vadd.f32 %v863, %v868
        %v903 = vsub.f32 0.0, %v871
        %v904 = vsub.f32 0.0, %v873
        %v905 = vsub.f32 0.0, %v875
        %v906 = vsub.f32 0.0, %v877
        %v907 = vsub.f32 0.0, %v879
        %v908 = vsub.f32 0.0, %v881
        %v909 = vsub.f32 0.0, %v883
        %v910 = vsub.f32 0.0, %v885
        %v911 = vsub.f32 0.0, %v887
        %v912 = vsub.f32 0.0, %v889
        %v913 = vsub.f32 0.0, %v891
        %v914 = vsub.f32 0.0, %v893
        %v915 = vsub.f32 0.0, %v895
        %v916 = vsub.f32 0.0, %v897
        %v917 = vsub.f32 0.0, %v899
        %v918 = vsub.f32 0.0, %v901
        %v919 = vmul.f32 %v903, 1.442695
        %v920 = vpow.pop %v919
        %v921 = vmul.f32 %v904, 1.442695
        %v922 = vpow.pop %v921
        %v923 = vmul.f32 %v905, 1.442695
        %v924 = vpow.pop %v923
        %v925 = vmul.f32 %v906, 1.442695
        %v926 = vpow.pop %v925
        %v927 = vmul.f32 %v907, 1.442695
        %v928 = vpow.pop %v927
        %v929 = vmul.f32 %v908, 1.442695
        %v930 = vpow.pop %v929
        %v931 = vmul.f32 %v909, 1.442695
        %v932 = vpow.pop %v931
        %v933 = vmul.f32 %v910, 1.442695
        %v934 = vpow.pop %v933
        %v935 = vmul.f32 %v911, 1.442695
        %v936 = vpow.pop %v935
        %v937 = vmul.f32 %v912, 1.442695
        %v938 = vpow.pop %v937
        %v939 = vmul.f32 %v913, 1.442695
        %v940 = vpow.pop %v939
        %v941 = vmul.f32 %v914, 1.442695
        %v942 = vpow.pop %v941
        %v943 = vmul.f32 %v915, 1.442695
        %v944 = vpow.pop %v943
        %v945 = vmul.f32 %v916, 1.442695
        %v946 = vpow.pop %v945
        %v947 = vmul.f32 %v917, 1.442695
        %v948 = vpow.pop %v947
        %v949 = vmul.f32 %v918, 1.442695
        %v950 = vpow.pop %v949
        %v951 = vadd.f32 %v920, 1.0
        %v952 = vadd.f32 %v922, 1.0
        %v953 = vadd.f32 %v924, 1.0
        %v954 = vadd.f32 %v926, 1.0
        %v955 = vadd.f32 %v928, 1.0
        %v956 = vadd.f32 %v930, 1.0
        %v957 = vadd.f32 %v932, 1.0
        %v958 = vadd.f32 %v934, 1.0
        %v959 = vadd.f32 %v936, 1.0
        %v960 = vadd.f32 %v938, 1.0
        %v961 = vadd.f32 %v940, 1.0
        %v962 = vadd.f32 %v942, 1.0
        %v963 = vadd.f32 %v944, 1.0
        %v964 = vadd.f32 %v946, 1.0
        %v965 = vadd.f32 %v948, 1.0
        %v966 = vadd.f32 %v950, 1.0
        %v967 = vrcp.pop %v951
        %v968 = vrcp.pop %v952
        %v969 = vrcp.pop %v953
        %v970 = vrcp.pop %v954
        %v971 = vrcp.pop %v955
        %v972 = vrcp.pop %v956
        %v973 = vrcp.pop %v957
        %v974 = vrcp.pop %v958
        %v975 = vrcp.pop %v959
        %v976 = vrcp.pop %v960
        %v977 = vrcp.pop %v961
        %v978 = vrcp.pop %v962
        %v979 = vrcp.pop %v963
        %v980 = vrcp.pop %v964
        %v981 = vrcp.pop %v965
        %v982 = vrcp.pop %v966
        %v983 = vmul.f32 %v871, %v967
        %v984 = vmul.f32 %v873, %v968
        %v985 = vmul.f32 %v875, %v969
        %v986 = vmul.f32 %v877, %v970
        %v987 = vmul.f32 %v879, %v971
        %v988 = vmul.f32 %v881, %v972
        %v989 = vmul.f32 %v883, %v973
        %v990 = vmul.f32 %v885, %v974
        %v991 = vmul.f32 %v887, %v975
        %v992 = vmul.f32 %v889, %v976
        %v993 = vmul.f32 %v891, %v977
        %v994 = vmul.f32 %v893, %v978
        %v995 = vmul.f32 %v895, %v979
        %v996 = vmul.f32 %v897, %v980
        %v997 = vmul.f32 %v899, %v981
        %v998 = vmul.f32 %v901, %v982
        %v999 = vmul.f32 %v983, %v872
        %v1000 = vmul.f32 %v984, %v874
        %v1001 = vmul.f32 %v985, %v876
        %v1002 = vmul.f32 %v986, %v878
        %v1003 = vmul.f32 %v987, %v880
        %v1004 = vmul.f32 %v988, %v882
        %v1005 = vmul.f32 %v989, %v884
        %v1006 = vmul.f32 %v990, %v886
        %v1007 = vmul.f32 %v991, %v888
        %v1008 = vmul.f32 %v992, %v890
        %v1009 = vmul.f32 %v993, %v892
        %v1010 = vmul.f32 %v994, %v894
        %v1011 = vmul.f32 %v995, %v896
        %v1012 = vmul.f32 %v996, %v898
        %v1013 = vmul.f32 %v997, %v900
        %v1014 = vmul.f32 %v998, %v902
        %1015 = vxpose.xlu0.b32.start [1/16] %v999, 128
        %1016 = vxpose.xlu0.b32.cont [2/16] %v1000, 128
        %1017 = vxpose.xlu0.b32.cont [3/16] %v1001, 128
        %1018 = vxpose.xlu0.b32.cont [4/16] %v1002, 128
        %1019 = vxpose.xlu0.b32.cont [5/16] %v1003, 128
        %1020 = vxpose.xlu0.b32.cont [6/16] %v1004, 128
        %1021 = vxpose.xlu0.b32.cont [7/16] %v1005, 128
        %1022 = vxpose.xlu0.b32.cont [8/16] %v1006, 128
        %1023 = vxpose.xlu0.b32.cont [9/16] %v1007, 128
        %1024 = vxpose.xlu0.b32.cont [10/16] %v1008, 128
        %1025 = vxpose.xlu0.b32.cont [11/16] %v1009, 128
        %1026 = vxpose.xlu0.b32.cont [12/16] %v1010, 128
        %1027 = vxpose.xlu0.b32.cont [13/16] %v1011, 128
        %1028 = vxpose.xlu0.b32.cont [14/16] %v1012, 128
        %1029 = vxpose.xlu0.b32.cont [15/16] %v1013, 128
        %1030 = vxpose.xlu0.b32.end [16/16] %v1014, 128
        %v1031 = vpop.trf.xlu0
        %v1032 = vpop.trf.xlu0
        %v1033 = vpop.trf.xlu0
        %v1034 = vpop.trf.xlu0
        %v1035 = vpop.trf.xlu0
        %v1036 = vpop.trf.xlu0
        %v1037 = vpop.trf.xlu0
        %v1038 = vpop.trf.xlu0
        %v1039 = vpop.trf.xlu0
        %v1040 = vpop.trf.xlu0
        %v1041 = vpop.trf.xlu0
        %v1042 = vpop.trf.xlu0
        %v1043 = vpop.trf.xlu0
        %v1044 = vpop.trf.xlu0
        %v1045 = vpop.trf.xlu0
        %v1046 = vpop.trf.xlu0
        %v1047 = vadd.f32 %v1031, %v1032
        %v1048 = vadd.f32 %v1047, %v1033
        %v1049 = vadd.f32 %v1048, %v1034
        %v1050 = vadd.f32 %v1049, %v1035
        %v1051 = vadd.f32 %v1050, %v1036
        %v1052 = vadd.f32 %v1051, %v1037
        %v1053 = vadd.f32 %v1052, %v1038
        %v1054 = vadd.f32 %v1053, %v1039
        %v1055 = vadd.f32 %v1054, %v1040
        %v1056 = vadd.f32 %v1055, %v1041
        %v1057 = vadd.f32 %v1056, %v1042
        %v1058 = vadd.f32 %v1057, %v1043
        %v1059 = vadd.f32 %v1058, %v1044
        %v1060 = vadd.f32 %v1059, %v1045
        %v1061 = vadd.f32 %v1060, %v1046
        %v1062 = vrot.slane %v1061, 4
        %v1063 = vadd.f32 %v1061, %v1062
        %v1064 = vrot.slane %v1063, 2
        %v1065 = vadd.f32 %v1063, %v1064
        %v1066 = vrot.slane %v1065, 1
        %v1067 = vadd.f32 %v1065, %v1066
        %s1068 = sld [smem:[#allocation2]]
        %v1069 = vstv %s1068
        %v1070 = vadd.f32 %v1067, %v1069
        %1071 = vst [vmem:[%s346] sm:$0x1] %v1070
        %s1072 = sand.u32 %s172, 1
        %s1073 = scalar_lea.sflag [#allocation5], %s1072
        %s1074 = sand.u32 %s172, 1
        %s1075 = scalar_lea.vmem [#allocation11], %s1074
        // Predicated region
        $region61: #{tpu_custom_call.1} parent=43 // pred_check
          %p1076 = pneg %p182
        $region62: #{tpu_custom_call.1} parent=43 // pred_check_branch
          %1078 = sbr.rel (%p1076) target = $region64
        $region63: #{tpu_custom_call.1} parent=43 // pred_region
          %1080 = vsyncadd %s1073, 0
          %s1081 = scalar_lea.hbm %s6, %s28
          %s1083 = sshll.u32 %s1075, 4
          %s1084 = int_to_ptr.vmem [resolvable:$true] %s1083
          %s1085 = sshll.u32 %s1081, 4
          %s1086 = int_to_ptr.hbm [resolvable:$true] %s1085
          %1088 = dma.vmem_to_hbm [thread:$0]  %s1084, 16, %s1086, %s1073
        $region64: #{tpu_custom_call.1} parent=43 // pred_fallthru
          _
      $region44: #{tpu_custom_call.1} parent=5 // pred_fallthru
        _
      %p1089 = scmp.le.s32.totalorder 2, %s23
      // Predicated region
      $region65: #{tpu_custom_call.1} parent=5 // pred_check
        %p1090 = pneg %p1089
      $region66: #{tpu_custom_call.1} parent=5 // pred_check_branch
        %1092 = sbr.rel (%p1090) target = $region68
      $region67: #{tpu_custom_call.1} parent=5 // pred_region
        %s1093 = ssub.s32 %s23, 2
        // Predicated region
        $region69: #{tpu_custom_call.1} parent=67 // pred_check
          %p1094 = pneg %p188
        $region70: #{tpu_custom_call.1} parent=67 // pred_check_branch
          %1096 = sbr.rel (%p1094) target = $region72
        $region71: #{tpu_custom_call.1} parent=67 // pred_region
          %s1097 = sand.u32 %s173, 1
          %s1098 = scalar_lea.sflag [#allocation5], %s1097
          %s1099 = sand.u32 %s173, 1
          %s1100 = scalar_lea.vmem [#allocation11], %s1099
          %1102 = dma.done %s1098, 16
        $region72: #{tpu_custom_call.1} parent=67 // pred_fallthru
          _
      $region68: #{tpu_custom_call.1} parent=5 // pred_fallthru
        _
    $region6: #{tpu_custom_call.1} parent=1 // loop_footer
      %s27 = sadd.s32 1, %s23
    $region7: #{tpu_custom_call.1} parent=1 // loop_footer_branch
      %22 = sbr.rel target = $region3
    $region8: #{tpu_custom_call.1} parent=1 // loop_exit
      _
    %1103 = vsyncpa [#allocation4], 1
    %s1104 = scalar_lea.sflag [#allocation4], 1
    %1105 = vsyncpa %s1104, 1
    %1106 = vsyncpa [#allocation7], 1
    %s1107 = scalar_lea.sflag [#allocation7], 1
    %1108 = vsyncpa %s1107, 1
    %1109 = vsyncpa [#allocation10], 1
    %1110 = vsyncpa [#allocation5], 1
    %s1111 = scalar_lea.sflag [#allocation5], 1
    %1112 = vsyncpa %s1111, 1

</llo_original>
